<compile_context>
chip_gen: v5e
topology: v5e:2x2
jax: 0.10.0
libtpu: 0.0.40
codegen_flags: <defaults>
</compile_context>

<pallas_src>
import functools

import jax
import jax.numpy as jnp
from jax.experimental import pallas as pl
from jax.experimental.pallas import tpu as pltpu


def _layernorm_kernel(x_ref, gb_ref, o_ref, *, eps, features):
    # x_ref: (TILE_ROWS, F); gb_ref: (2, F) -> row 0 = gamma, row 1 = beta.
    x = x_ref[...].astype(jnp.float32)
    gamma = gb_ref[0:1, :].astype(jnp.float32)   # (1, F)
    beta = gb_ref[1:2, :].astype(jnp.float32)    # (1, F)

    mean = jnp.mean(x, axis=-1, keepdims=True)
    diff = x - mean
    # PyTorch x.std(dim=-1) uses Bessel's correction (divide by N-1), and the
    # reference adds eps to std (not var) — keep that exactly.
    # NOTE: features must be > 1 (otherwise N-1 == 0, as in the PyTorch ref).
    var = jnp.sum(diff * diff, axis=-1, keepdims=True) * jnp.float32(
        1.0 / (features - 1))
    std = jnp.sqrt(var)
    # Exact reciprocal: the kernel is HBM-bandwidth bound, so the EUP/VALU
    # slack makes exact numerics free (review item).  inv is only (tile, 1).
    inv = jnp.float32(1.0) / (std + jnp.float32(eps))
    y = diff * inv * gamma + beta
    o_ref[...] = y.astype(o_ref.dtype)


def _round_up(x, m):
    return (x + m - 1) // m * m


def _sublane_quantum(dtype):
    # f32 packs 8 rows per vreg sublane group, bf16 16, int8/fp8 32.
    itemsize = jnp.dtype(dtype).itemsize
    return {4: 8, 2: 16, 1: 32}.get(itemsize, 8)


def _target_tile_bytes():
    # Per-generation tile target: v5e has only 16 MiB scoped VMEM by default
    # (2 MiB tile x 2 streams x 2 buffers = 8 MiB); v6e/v7x have 32 MiB scoped,
    # and v7x's ~3.2 TB/s HBM benefits from bigger tiles (4 MiB -> 16 MiB).
    try:
        kind = jax.devices()[0].device_kind.lower()
    except Exception:
        return 2 << 20
    if "v5" in kind:
        return 2 << 20
    return 4 << 20


def layer_norm_pallas(x, gamma, beta, *, eps=1e-6, tile_rows=None, min_steps=4):
    """LayerNormalization over the last axis, matching the PyTorch module."""
    orig_shape = x.shape
    features = orig_shape[-1]
    assert features > 1, "features must be > 1 (Bessel correction divides by N-1)"
    x2d = x.reshape(-1, features)
    rows = x2d.shape[0]
    itemsize = jnp.dtype(x2d.dtype).itemsize
    sub = _sublane_quantum(x2d.dtype)
    rows_q = _round_up(rows, sub)

    if tile_rows is None:
        # Cap the tile at the per-chip VMEM target, but also force enough grid
        # steps (>= min_steps when the row count allows it) so the BlockSpec
        # pipeline overlaps DMA-in / compute / DMA-out instead of serializing.
        target_bytes = _target_tile_bytes()
        t_max = max(sub, (target_bytes // (features * itemsize)) // sub * sub)
        steps = max(pl.cdiv(rows_q, t_max), min_steps)
        steps = max(1, min(steps, rows_q // sub))     # keep tile >= sublane quantum
        tile_rows = _round_up(pl.cdiv(rows_q, steps), sub)
    else:
        tile_rows = max(sub, _round_up(tile_rows, sub))
        tile_rows = min(tile_rows, rows_q)
    # TODO(synk): for extreme feature counts (100K+), even an 8-row tile x 4
    # buffers can exceed v7x's 32 MiB scoped VMEM default; raise
    # vmem_limit_bytes (pltpu.CompilerParams) or feature-tile the norm.

    steps = pl.cdiv(rows_q, tile_rows)
    rows_padded = steps * tile_rows

    # Avoid partial trailing blocks entirely: pad rows to an exact multiple of
    # tile_rows (zero rows normalize to finite zeros — no NaN/Inf) and slice
    # the pad off afterwards.  No-op / no copy when rows already divides.
    if rows_padded != rows:
        x2d = jnp.pad(x2d, ((0, rows_padded - rows), (0, 0)))

    # Pack gamma/beta into a single resident (2, F) block (one fewer stream).
    params = jnp.stack(
        [gamma.reshape(features), beta.reshape(features)], axis=0)

    kernel = functools.partial(_layernorm_kernel, eps=eps, features=features)

    out = pl.pallas_call(
        kernel,
        out_shape=jax.ShapeDtypeStruct((rows_padded, features), x.dtype),
        grid_spec=pltpu.PrefetchScalarGridSpec(
            num_scalar_prefetch=0,
            grid=(steps,),
            in_specs=[
                pl.BlockSpec((tile_rows, features), lambda i: (i, 0)),
                pl.BlockSpec((2, features), lambda i: (0, 0)),
            ],
            out_specs=pl.BlockSpec((tile_rows, features), lambda i: (i, 0)),
        ),
        compiler_params=pltpu.CompilerParams(
            dimension_semantics=("parallel",),
        ),
        cost_estimate=pl.CostEstimate(
            flops=8 * rows * features,
            transcendentals=2 * rows,
            bytes_accessed=2 * rows * features * itemsize + 2 * features * 4,
        ),
    )(x2d, params)

    if rows_padded != rows:
        out = out[:rows]
    return out.reshape(orig_shape)


class Decoder:
    """JAX/Pallas port of the PyTorch Decoder module."""

    def __init__(self, features: int, layers=()):
        self.features = features
        # LayerNormalization parameters, initialized exactly as in __init__.
        self.gamma = jnp.ones((features,), dtype=jnp.float32)
        self.beta = jnp.zeros((features,), dtype=jnp.float32)
        self.eps = 1e-6
        # TODO(synk): the reference passes an opaque nn.ModuleList; concrete
        # decoder-block layers are not defined in the given code, so `layers`
        # is a list of callables (empty -> identity pass-through).  When real
        # blocks exist, this norm should be fused into the last block's
        # epilogue to remove the extra read+write of the full activation.
        self.layers = list(layers)

    def __call__(self, x, encoder_out, src_mask, target_mask):
        for layer in self.layers:
            x = layer(x, encoder_out, src_mask, target_mask)
        return layer_norm_pallas(x, self.gamma, self.beta, eps=self.eps)


def _layer_norm_ref(x, gamma, beta, eps=1e-6):
    mean = jnp.mean(x, axis=-1, keepdims=True)
    # unbiased std, matching torch.std default
    var = jnp.sum((x - mean) ** 2, axis=-1, keepdims=True) / (x.shape[-1] - 1)
    std = jnp.sqrt(var)
    return gamma * (x - mean) / (std + eps) + beta


if __name__ == "__main__":
    batch, seq, features = 2, 8, 128  # lane-dense feature axis (multiple of 128)

    key = jax.random.PRNGKey(0)
    kx, ke = jax.random.split(key)
    x = jax.random.normal(kx, (batch, seq, features), dtype=jnp.float32)
    encoder_out = jax.random.normal(ke, (batch, seq, features), dtype=jnp.float32)
    src_mask = jnp.ones((batch, 1, 1, seq), dtype=jnp.float32)
    target_mask = jnp.ones((batch, 1, seq, seq), dtype=jnp.float32)

    decoder = Decoder(features, layers=())
    out = decoder(x, encoder_out, src_mask, target_mask)
    out = jax.block_until_ready(out)

    # sanity check against plain-JAX reference (exact numerics -> tight tol)
    ref = _layer_norm_ref(x, decoder.gamma, decoder.beta, decoder.eps)
    assert out.shape == (batch, seq, features)
    assert jnp.max(jnp.abs(out - ref)) < 1e-4

    # also exercise a ragged, multi-tile shape: rows = 3*37 = 111 is not a
    # multiple of the tile quantum -> pad-to-exact-grid + slice path.
    x_big = jax.random.normal(key, (3, 37, features), dtype=jnp.float32)
    out_big = jax.block_until_ready(
        layer_norm_pallas(x_big, decoder.gamma, decoder.beta,
                          eps=decoder.eps, tile_rows=64))
    ref_big = _layer_norm_ref(x_big, decoder.gamma, decoder.beta, decoder.eps)
    assert out_big.shape == x_big.shape
    assert jnp.max(jnp.abs(out_big - ref_big)) < 1e-4

    # and the automatic tile-sizing path on the same ragged shape
    out_auto = jax.block_until_ready(
        layer_norm_pallas(x_big, decoder.gamma, decoder.beta, eps=decoder.eps))
    assert jnp.max(jnp.abs(out_auto - ref_big)) < 1e-4

    print("KERNEL_OK")
</pallas_src>

<mosaic_0001>
module attributes {stable_mosaic.version = 11 : i64} {
  func.func @_layernorm_kernel(%arg0: i32, %arg1: memref<8x128xf32, #tpu.memory_space<vmem>>, %arg2: memref<2x128xf32, #tpu.memory_space<vmem>>, %arg3: memref<8x128xf32, #tpu.memory_space<vmem>>) attributes {dimension_semantics = [#tpu.dimension_semantics<parallel>], iteration_bounds = array<i64: 2>, scalar_prefetch = 0 : i64, scratch_operands = 0 : i64, tpu.core_type = #tpu.core_type<tc>, window_params = [{transform_indices = @transform_0, window_bounds = array<i64: 8, 128>}, {pipeline_mode = #tpu.pipeline_mode<synchronous>, transform_indices = @transform_1, window_bounds = array<i64: 2, 128>}, {transform_indices = @transform_2, window_bounds = array<i64: 8, 128>}]} {
    %c0 = arith.constant 0 : index
    %c0_0 = arith.constant 0 : index
    %0 = vector.load %arg1[%c0, %c0_0] : memref<8x128xf32, #tpu.memory_space<vmem>>, vector<8x128xf32>
    %c0_1 = arith.constant 0 : index
    %c0_2 = arith.constant 0 : index
    %1 = vector.load %arg2[%c0_1, %c0_2] : memref<2x128xf32, #tpu.memory_space<vmem>>, vector<1x128xf32>
    %c1 = arith.constant 1 : index
    %c0_3 = arith.constant 0 : index
    %2 = vector.load %arg2[%c1, %c0_3] : memref<2x128xf32, #tpu.memory_space<vmem>>, vector<1x128xf32>
    %cst = arith.constant dense<0.000000e+00> : vector<8xf32>
    %3 = vector.multi_reduction <add>, %0, %cst [1] : vector<8x128xf32> to vector<8xf32>
    %4 = vector.shape_cast %3 : vector<8xf32> to vector<8x1xf32>
    %cst_4 = arith.constant 1.280000e+02 : f32
    %5 = vector.broadcast %cst_4 : f32 to vector<8x1xf32>
    %6 = arith.divf %4, %5 : vector<8x1xf32>
    %7 = vector.broadcast %6 : vector<8x1xf32> to vector<8x128xf32>
    %8 = arith.subf %0, %7 : vector<8x128xf32>
    %9 = arith.mulf %8, %8 : vector<8x128xf32>
    %cst_5 = arith.constant dense<0.000000e+00> : vector<8xf32>
    %10 = vector.multi_reduction <add>, %9, %cst_5 [1] : vector<8x128xf32> to vector<8xf32>
    %11 = vector.shape_cast %10 : vector<8xf32> to vector<8x1xf32>
    %cst_6 = arith.constant 0.00787401571 : f32
    %12 = vector.broadcast %cst_6 : f32 to vector<8x1xf32>
    %13 = arith.mulf %11, %12 : vector<8x1xf32>
    %14 = math.sqrt %13 : vector<8x1xf32>
    %cst_7 = arith.constant 9.99999997E-7 : f32
    %15 = vector.broadcast %cst_7 : f32 to vector<8x1xf32>
    %16 = arith.addf %14, %15 : vector<8x1xf32>
    %cst_8 = arith.constant 1.000000e+00 : f32
    %17 = vector.broadcast %cst_8 : f32 to vector<8x1xf32>
    %18 = arith.divf %17, %16 : vector<8x1xf32>
    %19 = vector.broadcast %18 : vector<8x1xf32> to vector<8x128xf32>
    %20 = arith.mulf %8, %19 : vector<8x128xf32>
    %21 = vector.broadcast %1 : vector<1x128xf32> to vector<8x128xf32>
    %22 = arith.mulf %20, %21 : vector<8x128xf32>
    %23 = vector.broadcast %2 : vector<1x128xf32> to vector<8x128xf32>
    %24 = arith.addf %22, %23 : vector<8x128xf32>
    %c0_9 = arith.constant 0 : index
    %c0_10 = arith.constant 0 : index
    %25 = vector.load %arg3[%c0_9, %c0_10] : memref<8x128xf32, #tpu.memory_space<vmem>>, vector<8x128xf32>
    tpu.vector_store %arg3[%c0_9, %c0_10], %24 {strides = array<i32>} : memref<8x128xf32, #tpu.memory_space<vmem>>, vector<8x128xf32>,
    return
  }
  func.func @transform_0(%arg0: i32) -> (i32, i32) {
    %c0_i32 = arith.constant 0 : i32
    %c0_i32_0 = arith.constant 0 : i32
    return %arg0, %c0_i32 : i32, i32
  }
  func.func @transform_1(%arg0: i32) -> (i32, i32) {
    %c0_i32 = arith.constant 0 : i32
    %c0_i32_0 = arith.constant 0 : i32
    %c0_i32_1 = arith.constant 0 : i32
    return %c0_i32, %c0_i32_0 : i32, i32
  }
  func.func @transform_2(%arg0: i32) -> (i32, i32) {
    %c0_i32 = arith.constant 0 : i32
    %c0_i32_0 = arith.constant 0 : i32
    return %arg0, %c0_i32 : i32, i32
  }
}

</mosaic_0001>

<llo_original>
// kernel: tpu_custom_call.1
$region0: #{tpu_custom_call.1}
  #allocation0 [shape = 'u32[]', space=smem, size = 0x4, offset = 0x4, fixed_abs, tag = 'smem constant byte address 0x4 - core index']
  #allocation1 [shape = 'u32[72,128]{1,0:T(1,128)}', space=vmem, size = 0x9000, scoped, tag = 'internal scratch']
  %s0 = inlined_call_operand.hbm [shape: f32[16,128], index: 0, kind: input, shape index: {}]
  %s1 = inlined_call_operand.hbm [shape: f32[2,128], index: 1, kind: input, shape index: {}]
  %s2 = inlined_call_operand.hbm [shape: f32[16,128], index: 2, kind: output, shape index: {}]
  %s3 = sld [smem:[#allocation0]]
  $region49: #{tpu_custom_call.1} parent=0
    _
  %s5 = ssub.s32 1, %s3
  %s6 = scalar_select 0, %s5, %s3
  $region1: #{tpu_custom_call.1} parent=0
    #allocation2 [shape = 'u8[8192]{0}', space=vmem, size = 0x2000, scoped, tag = 'input window, operand 0']
    #allocation3 [shape = 's32[2]{0}', space=sflag, size = 0x8, scoped, tag = 'scoped memory for tpu_custom_call.1']
    #allocation4 [shape = 's32[2]{0}', space=sflag, size = 0x8, scoped, tag = 'scoped memory for tpu_custom_call.1']
    #allocation5 [shape = 'u8[1024]{0}', space=vmem, size = 0x400, scoped, tag = 'input window, operand 1, single buffered']
    #allocation6 [shape = 's32[1]{0}', space=sflag, size = 0x4, scoped, tag = 'scoped memory for tpu_custom_call.1']
    #allocation7 [shape = 'u8[8192]{0}', space=vmem, size = 0x2000, scoped, tag = 'output window, operand 0']
    %7 = vsyncpa [#allocation3], 0
    %s8 = scalar_lea.sflag [#allocation3], 1
    %9 = vsyncpa %s8, 0
    %10 = vsyncpa [#allocation6], 0
    %11 = vsyncpa [#allocation4], 0
    %s12 = scalar_lea.sflag [#allocation4], 1
    %13 = vsyncpa %s12, 0
    loop: start=0, step=1, limit=4
    $region2: #{tpu_custom_call.1} parent=1 // loop_pre_header
      _
    $region3: #{tpu_custom_call.1} parent=1 // loop_header
      %s15 = sphi 0, %s19
      %p16 = scmp.ge.s32.totalorder %s15, 4
      %s25 = sphi 0, %s27
      %s28 = sphi 0, %s25
      %s29 = sphi 0, %s28
      %s45 = sphi 0, %s29
      %s49 = sphi 0, %s49
      %s51 = sphi 0, %s49
      %s52 = sphi 0, %s51
      %s66 = sphi 0, %s52
      %s72 = sphi 0, %s74
      %s75 = sphi 0, %s72
      %s76 = sphi 0, %s75
      %s92 = sphi 0, %s76
    $region4: #{tpu_custom_call.1} parent=1 // loop_header_branch
      %18 = sbr.rel (%p16) target = $region8
    $region5: #{tpu_custom_call.1} parent=1 // loop_body
      %s20 = ssub.s32 %s15, 1
      %s21 = ssub.s32 %s15, 2
      %s22 = sadd.s32 %s15, 1
      %s23 = ssub.s32 %s15, %s22
      %p24 = scmp.eq.s32.totalorder %s23, 0
      %s26 = sadd.s32 %s25, 1
      %s27 = scalar_select %p24, %s25, %s26
      %p30 = pneg %p24
      %p31 = scmp.eq.s32.totalorder %s15, 1
      %p32 = por %p30, %p31
      %p33 = scmp.ne.s32.totalorder %s25, %s28
      %p34 = scmp.eq.s32.totalorder %s15, 0
      %p35 = por %p33, %p34
      %p36 = scmp.ne.s32.totalorder %s25, %s28
      %p37 = scmp.eq.s32.totalorder %s20, 1
      %p38 = por %p36, %p37
      %p39 = scmp.ne.s32.totalorder %s28, %s29
      %p40 = scmp.eq.s32.totalorder %s20, 0
      %p41 = por %p39, %p40
      %p42 = scmp.ne.s32.totalorder %s28, %s29
      %p43 = scmp.eq.s32.totalorder %s21, 1
      %p44 = por %p42, %p43
      %p46 = scmp.ne.s32.totalorder %s29, %s45
      %p47 = scmp.eq.s32.totalorder %s21, 0
      %p48 = por %p46, %p47
      %s50 = sadd.s32 %s49, 1
      %p53 = scmp.eq.s32.totalorder %s15, 1
      %p54 = scmp.ne.s32.totalorder %s49, %s51
      %p55 = scmp.eq.s32.totalorder %s15, 0
      %p56 = por %p54, %p55
      %p57 = scmp.ne.s32.totalorder %s49, %s51
      %p58 = scmp.eq.s32.totalorder %s20, 1
      %p59 = por %p57, %p58
      %p60 = scmp.ne.s32.totalorder %s51, %s52
      %p61 = scmp.eq.s32.totalorder %s20, 0
      %p62 = por %p60, %p61
      %p63 = scmp.ne.s32.totalorder %s51, %s52
      %p64 = scmp.eq.s32.totalorder %s21, 1
      %p65 = por %p63, %p64
      %p67 = scmp.ne.s32.totalorder %s52, %s66
      %p68 = scmp.eq.s32.totalorder %s21, 0
      %p69 = por %p67, %p68
      %s70 = ssub.s32 %s15, %s22
      %p71 = scmp.eq.s32.totalorder %s70, 0
      %s73 = sadd.s32 %s72, 1
      %s74 = scalar_select %p71, %s72, %s73
      %p77 = pneg %p71
      %p78 = scmp.eq.s32.totalorder %s15, 1
      %p79 = por %p77, %p78
      %p80 = scmp.ne.s32.totalorder %s72, %s75
      %p81 = scmp.eq.s32.totalorder %s15, 0
      %p82 = por %p80, %p81
      %p83 = scmp.ne.s32.totalorder %s72, %s75
      %p84 = scmp.eq.s32.totalorder %s20, 1
      %p85 = por %p83, %p84
      %p86 = scmp.ne.s32.totalorder %s75, %s76
      %p87 = scmp.eq.s32.totalorder %s20, 0
      %p88 = por %p86, %p87
      %p89 = scmp.ne.s32.totalorder %s75, %s76
      %p90 = scmp.eq.s32.totalorder %s21, 1
      %p91 = por %p89, %p90
      %p93 = scmp.ne.s32.totalorder %s76, %s92
      %p94 = scmp.eq.s32.totalorder %s21, 0
      %p95 = por %p93, %p94
      %p96 = scmp.le.s32.totalorder 1, %s15
      %p97 = scmp.lt.s32.totalorder %s15, 3
      %p98 = pnand %p96, %p97
      %p99 = pneg %p98
      // Predicated region
      $region9: #{tpu_custom_call.1} parent=5 // pred_check
        _
      $region10: #{tpu_custom_call.1} parent=5 // pred_check_branch
        %101 = sbr.rel (%p98) target = $region12
      $region11: #{tpu_custom_call.1} parent=5 // pred_region
        %s102 = ssub.s32 %s15, 1
        // Predicated region
        $region13: #{tpu_custom_call.1} parent=11 // pred_check
          %p103 = pneg %p62
        $region14: #{tpu_custom_call.1} parent=11 // pred_check_branch
          %105 = sbr.rel (%p103) target = $region16
        $region15: #{tpu_custom_call.1} parent=11 // pred_region
          %107 = vsyncadd [#allocation6], 0
          %s109 = sshll.u32 %s1, 4
          %s110 = int_to_ptr.hbm [resolvable:$true] %s109
          %s111 = sshll.u32 [#allocation5], 4
          %s112 = int_to_ptr.vmem [resolvable:$true] %s111
          %114 = dma.hbm_to_vmem [thread:$0]  %s110, 32, %s112, [#allocation6]
        $region16: #{tpu_custom_call.1} parent=11 // pred_fallthru
          _
      $region12: #{tpu_custom_call.1} parent=5 // pred_fallthru
        _
      %p115 = scmp.lt.s32.totalorder %s15, 2
      // Predicated region
      $region17: #{tpu_custom_call.1} parent=5 // pred_check
        %p116 = pneg %p115
      $region18: #{tpu_custom_call.1} parent=5 // pred_check_branch
        %118 = sbr.rel (%p116) target = $region20
      $region19: #{tpu_custom_call.1} parent=5 // pred_region
        // Predicated region
        $region21: #{tpu_custom_call.1} parent=19 // pred_check
          %p119 = pneg %p35
        $region22: #{tpu_custom_call.1} parent=19 // pred_check_branch
          %121 = sbr.rel (%p119) target = $region24
        $region23: #{tpu_custom_call.1} parent=19 // pred_region
          %s122 = sand.u32 %s25, 1
          %s123 = scalar_lea.sflag [#allocation3], %s122
          %s124 = sand.u32 %s25, 1
          %s125 = smul.addr %s124, 8
          %s126 = scalar_lea.vmem [#allocation2], %s125
          %128 = vsyncadd %s123, 0
          %s129 = smul.addr %s15, 8
          %s130 = scalar_lea.hbm %s0, %s129
          %s132 = sshll.u32 %s130, 4
          %s133 = int_to_ptr.hbm [resolvable:$true] %s132
          %s134 = sshll.u32 %s126, 4
          %s135 = int_to_ptr.vmem [resolvable:$true] %s134
          %137 = dma.hbm_to_vmem [thread:$0]  %s133, 128, %s135, %s123
        $region24: #{tpu_custom_call.1} parent=19 // pred_fallthru
          _
      $region20: #{tpu_custom_call.1} parent=5 // pred_fallthru
        _
      %p138 = scmp.le.s32.totalorder 1, %s15
      %p139 = scmp.lt.s32.totalorder %s15, 3
      %p140 = pnand %p138, %p139
      %p141 = pneg %p140
      // Predicated region
      $region25: #{tpu_custom_call.1} parent=5 // pred_check
        _
      $region26: #{tpu_custom_call.1} parent=5 // pred_check_branch
        %143 = sbr.rel (%p140) target = $region28
      $region27: #{tpu_custom_call.1} parent=5 // pred_region
        %s144 = ssub.s32 %s15, 1
        %s145 = sand.u32 %s28, 1
        %s146 = scalar_lea.sflag [#allocation3], %s145
        %s147 = sand.u32 %s28, 1
        %s148 = smul.addr %s147, 8
        %s149 = scalar_lea.vmem [#allocation2], %s148
        // Predicated region
        $region29: #{tpu_custom_call.1} parent=27 // pred_check
          %p150 = pneg %p41
        $region30: #{tpu_custom_call.1} parent=27 // pred_check_branch
          %152 = sbr.rel (%p150) target = $region32
        $region31: #{tpu_custom_call.1} parent=27 // pred_region
          %154 = dma.done %s146, 128
        $region32: #{tpu_custom_call.1} parent=27 // pred_fallthru
          _
        // Predicated region
        $region33: #{tpu_custom_call.1} parent=27 // pred_check
          %p155 = pneg %p62
        $region34: #{tpu_custom_call.1} parent=27 // pred_check_branch
          %157 = sbr.rel (%p155) target = $region36
        $region35: #{tpu_custom_call.1} parent=27 // pred_region
          %159 = dma.done [#allocation6], 32
        $region36: #{tpu_custom_call.1} parent=27 // pred_fallthru
          _
        %s160 = sand.u32 %s28, 1
        %s161 = scalar_lea.sflag [#allocation3], %s160
        %s162 = sand.u32 %s28, 1
        %s163 = smul.addr %s162, 8
        %s164 = scalar_lea.vmem [#allocation2], %s163
        %p165 = pneg %p41
        %p166 = pneg %p38
        %p167 = pneg %p62
        %p168 = pneg %p59
        %p169 = pneg %p88
        %p170 = pneg %p85
        %s171 = sand.u32 %s75, 1
        %s172 = scalar_lea.sflag [#allocation4], %s171
        %s173 = sand.u32 %s75, 1
        %s174 = smul.addr %s173, 8
        %s175 = scalar_lea.vmem [#allocation7], %s174
        %v176 = vld [vmem:[%s149] sm:$0xff]
        %v177 = vld [vmem:[#allocation5] sm:$0x1]
        %v178 = vld [vmem:[#allocation5 + $0x1] sm:$0x1]
        %179 = vadd.xlane.f32.xlu0 %v176
        %v180 = vpop.xlane.xlu0 %179
        %v181 = vrcp.pop 128.0
        %v182 = vmul.f32 128.0, %v181
        %v183 = vsub.f32 1.0, %v182
        %v184 = vmul.f32 %v181, %v183
        %v185 = vadd.f32 %v181, %v184
        %vm186 = vweird.f32 %v181
        %v187 = vsel %vm186, %v181, %v185
        %v188 = vmul.f32 %v180, %v187
        %v189 = vsub.f32 %v176, %v188
        %v190 = vmul.f32 %v189, %v189
        %191 = vadd.xlane.f32.xlu0 %v190
        %v192 = vpop.xlane.xlu0 %191
        %v193 = vmul.f32 %v192, 0.007874016
        %v194 = vrsqrt.pop %v193
        %v195 = vmul.f32 %v194, %v193
        %v196 = vmul.f32 %v195, %v194
        %v197 = vmul.f32 0.5, %v196
        %v198 = vsub.f32 1.5, %v197
        %v199 = vmul.f32 %v194, %v198
        %v200 = vmul.f32 %v193, %v199
        %vm201 = vcmp.eq.f32.partialorder %v193, inf
        %v202 = vsel %vm201, %v193, %v200
        %vm203 = vcmp.eq.f32.partialorder %v193, 0.0
        %v204 = vand.u32 %v193, 2147483648
        %v205 = vsel %vm203, %v204, %v202
        %v206 = vadd.f32 %v205, 1e-06
        %v207 = vrcp.pop %v206
        %v208 = vmul.f32 %v206, %v207
        %v209 = vsub.f32 1.0, %v208
        %v210 = vmul.f32 %v207, %v209
        %v211 = vadd.f32 %v207, %v210
        %vm212 = vweird.f32 %v206
        %vm213 = vweird.f32 %v207
        %vm214 = vmor %vm212, %vm213
        %v215 = vsel %vm214, %v207, %v211
        %v216 = vand.u32 2147483647, %v206
        %vm217 = vcmp.eq.f32.partialorder %v216, 8.507059e+37
        %v218 = vand.u32 %v206, 2147483648
        %v219 = vor.u32 1.1754944e-38, %v218
        %v220 = vsel %vm217, %v219, %v215
        %v221 = vmul.f32 1.0, %v220
        %v222 = vmul.f32 %v189, %v221
        %v223 = vperm.slane %v177, 0
        %v224 = vmul.f32 %v222, %v223
        %v225 = vperm.slane %v178, 0
        %v226 = vadd.f32 %v224, %v225
        %227 = vst [vmem:[%s175] sm:$0xff] %v226
        %s228 = sand.u32 %s75, 1
        %s229 = scalar_lea.sflag [#allocation4], %s228
        %s230 = sand.u32 %s75, 1
        %s231 = smul.addr %s230, 8
        %s232 = scalar_lea.vmem [#allocation7], %s231
        // Predicated region
        $region37: #{tpu_custom_call.1} parent=27 // pred_check
          %p233 = pneg %p85
        $region38: #{tpu_custom_call.1} parent=27 // pred_check_branch
          %235 = sbr.rel (%p233) target = $region40
        $region39: #{tpu_custom_call.1} parent=27 // pred_region
          %237 = vsyncadd %s229, 0
          %s238 = smul.addr %s20, 8
          %s239 = scalar_lea.hbm %s2, %s238
          %s241 = sshll.u32 %s232, 4
          %s242 = int_to_ptr.vmem [resolvable:$true] %s241
          %s243 = sshll.u32 %s239, 4
          %s244 = int_to_ptr.hbm [resolvable:$true] %s243
          %246 = dma.vmem_to_hbm [thread:$0]  %s242, 128, %s244, %s229
        $region40: #{tpu_custom_call.1} parent=27 // pred_fallthru
          _
      $region28: #{tpu_custom_call.1} parent=5 // pred_fallthru
        _
      %p247 = scmp.le.s32.totalorder 2, %s15
      // Predicated region
      $region41: #{tpu_custom_call.1} parent=5 // pred_check
        %p248 = pneg %p247
      $region42: #{tpu_custom_call.1} parent=5 // pred_check_branch
        %250 = sbr.rel (%p248) target = $region44
      $region43: #{tpu_custom_call.1} parent=5 // pred_region
        %s251 = ssub.s32 %s15, 2
        // Predicated region
        $region45: #{tpu_custom_call.1} parent=43 // pred_check
          %p252 = pneg %p91
        $region46: #{tpu_custom_call.1} parent=43 // pred_check_branch
          %254 = sbr.rel (%p252) target = $region48
        $region47: #{tpu_custom_call.1} parent=43 // pred_region
          %s255 = sand.u32 %s76, 1
          %s256 = scalar_lea.sflag [#allocation4], %s255
          %s257 = sand.u32 %s76, 1
          %s258 = smul.addr %s257, 8
          %s259 = scalar_lea.vmem [#allocation7], %s258
          %261 = dma.done %s256, 128
        $region48: #{tpu_custom_call.1} parent=43 // pred_fallthru
          _
      $region44: #{tpu_custom_call.1} parent=5 // pred_fallthru
        _
    $region6: #{tpu_custom_call.1} parent=1 // loop_footer
      %s19 = sadd.s32 1, %s15
    $region7: #{tpu_custom_call.1} parent=1 // loop_footer_branch
      %14 = sbr.rel target = $region3
    $region8: #{tpu_custom_call.1} parent=1 // loop_exit
      _
    %262 = vsyncpa [#allocation3], 1
    %s263 = scalar_lea.sflag [#allocation3], 1
    %264 = vsyncpa %s263, 1
    %265 = vsyncpa [#allocation6], 1
    %266 = vsyncpa [#allocation4], 1
    %s267 = scalar_lea.sflag [#allocation4], 1
    %268 = vsyncpa %s267, 1

</llo_original>
